<compile_context>
chip_gen: v7x
topology: tpu7x:2x2x1
jax: 0.10.0
libtpu: 0.0.40
codegen_flags: <defaults>
</compile_context>

<pallas_src>
import functools
import math

import jax
import jax.numpy as jnp
from jax import lax
from jax.experimental import pallas as pl
from jax.experimental.pallas import tpu as pltpu

_LANES = 128


def _round_up(x, m):
    return ((x + m - 1) // m) * m


def _tpu_config():
    """Best-effort (vmem_capacity_bytes, num_tensorcores) with safe fallbacks."""
    vmem_cap = 64 << 20          # conservative: v7x per-TC VMEM
    num_tc = 1
    try:
        info = pltpu.get_tpu_info()
        cap = getattr(info, "vmem_capacity_bytes", None)
        cores = None
        for attr in ("num_tensorcores", "tensorcore_count", "num_cores",
                     "core_count"):
            v = getattr(info, attr, None)
            if v:
                cores = int(v)
                break
        if cap is not None:
            vmem_cap = int(cap)
            if cores is None:
                # Heuristic: 64 MiB per-TC VMEM => v7x-class chip with 2 TCs.
                cores = 2 if vmem_cap <= (64 << 20) else 1
        if cores is not None:
            num_tc = max(1, min(2, cores))
    except Exception:
        pass
    return vmem_cap, num_tc


def _pick_blocking(rows, cap, row_align):
    """Pick (block_rows, chunk_rows): block_rows % chunk_rows == 0, both
    multiples of row_align (>= 8), chunk_rows <= 512 for big blocks."""
    cap = max(row_align, (cap // row_align) * row_align)
    block_rows = min(cap, _round_up(rows, row_align))
    if block_rows > 512:
        block_rows = min(cap, _round_up(rows, 512))
        block_rows = max(row_align, (block_rows // row_align) * row_align)
    if block_rows <= 512:
        return block_rows, block_rows
    chunk = row_align
    for c in range(512, row_align - 1, -row_align):
        if block_rows % c == 0:
            chunk = c
            break
    return block_rows, chunk


def _smooth_l1(p, t, beta):
    x = jnp.abs(p.astype(jnp.float32) - t.astype(jnp.float32))
    return jnp.where(x >= beta, x - 0.5 * beta, (0.5 / beta) * (x * x))


def _fold8(x):
    # (chunk_rows, 128) -> (8, 128) partial sums; cross-vreg VPU adds only.
    return x.reshape(-1, 8, _LANES).sum(axis=0)


def _row_ids(blk, block_rows, r0, chunk_rows):
    return (blk * block_rows + r0
            + lax.broadcasted_iota(jnp.int32, (chunk_rows, _LANES), 0))


# --------------------------- kernels -----------------------------------------

def _sum_kernel(pred_ref, tgt_ref, lacc_ref, *, beta, block_rows, chunk_rows,
                inner_blocks, mask_from, valid_rows):
    @pl.when(pl.program_id(1) == 0)
    def _init():
        lacc_ref[...] = jnp.zeros_like(lacc_ref)

    n_chunks = block_rows // chunk_rows
    blk = pl.program_id(0) * inner_blocks + pl.program_id(1)

    def partial_sums(masked):
        def body(c, acc):
            r0 = c * chunk_rows
            if not isinstance(r0, int):
                r0 = pl.multiple_of(r0, chunk_rows)
            loss = _smooth_l1(pred_ref[pl.ds(r0, chunk_rows), :],
                              tgt_ref[pl.ds(r0, chunk_rows), :], beta)
            if masked:
                valid = _row_ids(blk, block_rows, r0, chunk_rows) < valid_rows
                loss = jnp.where(valid, loss, 0.0)
            return acc + _fold8(loss)

        init = jnp.zeros((8, _LANES), jnp.float32)
        if n_chunks == 1:
            return body(0, init)
        return lax.fori_loop(0, n_chunks, body, init)

    if mask_from is None:
        lacc_ref[...] += partial_sums(False)
    else:
        @pl.when(blk < mask_from)
        def _interior():
            lacc_ref[...] += partial_sums(False)

        @pl.when(blk >= mask_from)
        def _edge():
            lacc_ref[...] += partial_sums(True)


def _weighted_body(pred_ref, tgt_ref, w_ref, lacc_ref, wlacc_ref, wacc_ref, *,
                   beta, block_rows, chunk_rows, inner_blocks, mask_from,
                   valid_rows):
    @pl.when(pl.program_id(1) == 0)
    def _init():
        lacc_ref[...] = jnp.zeros_like(lacc_ref)
        wlacc_ref[...] = jnp.zeros_like(wlacc_ref)
        if wacc_ref is not None:
            wacc_ref[...] = jnp.zeros_like(wacc_ref)

    n_chunks = block_rows // chunk_rows
    blk = pl.program_id(0) * inner_blocks + pl.program_id(1)
    n_acc = 3 if wacc_ref is not None else 2

    def partial_sums(masked):
        def body(c, accs):
            r0 = c * chunk_rows
            if not isinstance(r0, int):
                r0 = pl.multiple_of(r0, chunk_rows)
            loss = _smooth_l1(pred_ref[pl.ds(r0, chunk_rows), :],
                              tgt_ref[pl.ds(r0, chunk_rows), :], beta)
            # w is (chunk, 128) for elementwise weights or (chunk, 1) for the
            # compact per-row (per-sample) stream; broadcasting handles both.
            w = w_ref[pl.ds(r0, chunk_rows), :].astype(jnp.float32)
            if masked:
                valid = _row_ids(blk, block_rows, r0, chunk_rows) < valid_rows
                wloss = jnp.where(valid, loss * w, 0.0)
                loss = jnp.where(valid, loss, 0.0)
            else:
                wloss = loss * w
            new = [accs[0] + _fold8(loss), accs[1] + _fold8(wloss)]
            if wacc_ref is not None:
                wmat = jnp.where(valid, w, 0.0) if masked else w
                new.append(accs[2] + _fold8(wmat))
            return tuple(new)

        init = tuple(jnp.zeros((8, _LANES), jnp.float32) for _ in range(n_acc))
        if n_chunks == 1:
            return body(0, init)
        return lax.fori_loop(0, n_chunks, body, init)

    def accumulate(masked):
        parts = partial_sums(masked)
        lacc_ref[...] += parts[0]
        wlacc_ref[...] += parts[1]
        if wacc_ref is not None:
            wacc_ref[...] += parts[2]

    if mask_from is None:
        accumulate(False)
    else:
        @pl.when(blk < mask_from)
        def _interior():
            accumulate(False)

        @pl.when(blk >= mask_from)
        def _edge():
            accumulate(True)


def _make_weighted_kernel(with_wsum, **params):
    if with_wsum:
        def kernel(pred_ref, tgt_ref, w_ref, lacc_ref, wlacc_ref, wacc_ref):
            _weighted_body(pred_ref, tgt_ref, w_ref, lacc_ref, wlacc_ref,
                           wacc_ref, **params)
    else:
        def kernel(pred_ref, tgt_ref, w_ref, lacc_ref, wlacc_ref):
            _weighted_body(pred_ref, tgt_ref, w_ref, lacc_ref, wlacc_ref,
                           None, **params)
    return kernel


# --------------------------- wrapper ------------------------------------------

def smooth_l1_loss(pred, target, weights=None, *, beta=1.0 / 9.0,
                   reduction='mean', max_block_rows=None):
    """Forward pass matching the PyTorch SmoothL1Loss module (scalar f32)."""
    assert pred.shape == target.shape
    num = pred.shape[0]
    n = math.prod(pred.shape)
    beta = float(beta)

    p_flat = pred.reshape(-1)
    t_flat = target.reshape(-1)

    rows = n // _LANES            # full 128-lane rows handled by the kernel
    n_main = rows * _LANES        # <128-element remainder handled in plain JAX

    # Classify the weights layout so broadcasts are not materialized in HBM.
    w_mode = None
    if weights is not None:
        assert pred.shape[0] == target.shape[0] == weights.shape[0]
        wsize = math.prod(weights.shape)
        elems_per_sample = n // num if num > 0 else 0
        if weights.shape == pred.shape:
            w_mode = 'full'        # elementwise weights: stream as-is
        elif (num > 0 and wsize == num and n == num * elems_per_sample
              and elems_per_sample % _LANES == 0):
            w_mode = 'rows'        # per-sample scalar -> compact per-row stream
        else:
            # TODO(synk): general (non-per-sample) broadcast shapes are still
            # materialized to pred.shape before streaming.
            w_mode = 'bcast'

    zero = jnp.float32(0.0)
    kernel_lsum = zero
    kernel_wlsum = zero
    kernel_wsum = zero

    if rows > 0:
        itemsizes = [jnp.dtype(pred.dtype).itemsize,
                     jnp.dtype(target.dtype).itemsize]
        if w_mode in ('full', 'bcast'):
            itemsizes.append(jnp.dtype(weights.dtype).itemsize)
        # Sublane packing: f32 -> 8-row tiles, bf16 -> 16, int8/fp8 -> 32.
        row_align = max(8, 32 // max(1, min(itemsizes)))

        vmem_cap, num_tc = _tpu_config()
        vmem_limit = max(16 << 20, min(vmem_cap // 2, 64 << 20))
        budget = max(4 << 20, vmem_limit - (6 << 20))   # accs + temporaries
        per_row = 2 * _LANES * (jnp.dtype(pred.dtype).itemsize
                                + jnp.dtype(target.dtype).itemsize)
        if w_mode in ('full', 'bcast'):
            per_row += 2 * _LANES * jnp.dtype(weights.dtype).itemsize
        elif w_mode == 'rows':
            per_row += 2 * 4
        default_cap = 16384 if vmem_cap >= (128 << 20) else 8192
        cap = min(default_cap, budget // per_row)
        if max_block_rows is not None:
            cap = min(cap, int(max_block_rows))
        cap = max(row_align, cap)
        if cap > 512:
            cap = (cap // 512) * 512
        block_rows, chunk_rows = _pick_blocking(rows, cap, row_align)

        blocks_total = -(-rows // block_rows)
        num_splits = num_tc if (num_tc > 1 and blocks_total >= num_tc) else 1
        inner_blocks = -(-blocks_total // num_splits)
        n_logical = num_splits * inner_blocks
        last_partial = blocks_total * block_rows != rows
        if last_partial:
            mask_from = blocks_total - 1
        elif n_logical > blocks_total:
            mask_from = blocks_total
        else:
            mask_from = None

        def tile_map(c, i):
            # Clamp logically out-of-range blocks onto the last valid block;
            # their contribution is zeroed by the in-kernel mask (no OOB DMA).
            return (jnp.minimum(c * inner_blocks + i, blocks_total - 1), 0)

        data_spec = pl.BlockSpec((block_rows, _LANES), tile_map)
        acc_spec = pl.BlockSpec((None, 8, _LANES), lambda c, i: (c, 0, 0))
        acc_shape = jax.ShapeDtypeStruct((num_splits, 8, _LANES), jnp.float32)
        grid = (num_splits, inner_blocks)
        # TODO(synk): on v7x verify the leading "parallel" axis is actually
        # sharded across both TensorCores; if not, switch to pltpu.CORE_PARALLEL.
        cparams = pltpu.CompilerParams(
            dimension_semantics=("parallel", "arbitrary"),
            vmem_limit_bytes=int(vmem_limit))

        params = dict(beta=beta, block_rows=block_rows, chunk_rows=chunk_rows,
                      inner_blocks=inner_blocks, mask_from=mask_from,
                      valid_rows=rows)

        P = p_flat[:n_main].reshape(rows, _LANES)
        T = t_flat[:n_main].reshape(rows, _LANES)

        if weights is None:
            lacc = pl.pallas_call(
                functools.partial(_sum_kernel, **params),
                out_shape=acc_shape,
                grid_spec=pltpu.PrefetchScalarGridSpec(
                    num_scalar_prefetch=0, grid=grid,
                    in_specs=[data_spec, data_spec],
                    out_specs=acc_spec),
                compiler_params=cparams,
            )(P, T)
            kernel_lsum = jnp.sum(lacc)
        else:
            if w_mode == 'rows':
                rows_per_sample = (n // num) // _LANES
                row_w = jnp.repeat(weights.reshape(num).astype(jnp.float32),
                                   rows_per_sample)
                W = row_w.reshape(rows, 1)
                w_spec = pl.BlockSpec((block_rows, 1), tile_map)
            else:
                if w_mode == 'full':
                    w_flat = weights.reshape(-1)
                else:
                    w_flat = jnp.broadcast_to(weights, pred.shape).reshape(-1)
                W = w_flat[:n_main].reshape(rows, _LANES)
                w_spec = data_spec
            with_wsum = (w_mode == 'full')   # raw weight sum needs a full pass

            out_shape = (acc_shape, acc_shape) + ((acc_shape,) if with_wsum
                                                  else ())
            out_specs = (acc_spec,) * len(out_shape)
            outs = pl.pallas_call(
                _make_weighted_kernel(with_wsum, **params),
                out_shape=out_shape,
                grid_spec=pltpu.PrefetchScalarGridSpec(
                    num_scalar_prefetch=0, grid=grid,
                    in_specs=[data_spec, data_spec, w_spec],
                    out_specs=out_specs),
                compiler_params=cparams,
            )(P, T, W)
            kernel_lsum = jnp.sum(outs[0])
            kernel_wlsum = jnp.sum(outs[1])
            if with_wsum:
                kernel_wsum = jnp.sum(outs[2])

    # ---- <128-element tail, plain JAX (tiny) --------------------------------
    tail_lsum = zero
    tail_wlsum = zero
    tail_wsum = zero
    if n_main < n:
        x = jnp.abs(p_flat[n_main:].astype(jnp.float32)
                    - t_flat[n_main:].astype(jnp.float32))
        tail_loss = jnp.where(x >= beta, x - 0.5 * beta, (0.5 / beta) * (x * x))
        tail_lsum = jnp.sum(tail_loss)
        if weights is not None:
            if w_mode == 'full':
                w_tail = weights.reshape(-1)[n_main:].astype(jnp.float32)
                tail_wsum = jnp.sum(w_tail)
            else:
                w_tail = jnp.broadcast_to(weights, pred.shape).reshape(-1)[
                    n_main:].astype(jnp.float32)
            tail_wlsum = jnp.sum(tail_loss * w_tail)

    lsum = kernel_lsum + tail_lsum
    fallback = lsum / num if reduction == 'mean' else lsum
    if weights is None:
        return fallback

    # PyTorch semantics: denominator / >1e-6 check use the RAW weights tensor.
    if w_mode == 'full':
        wsum_raw = kernel_wsum + tail_wsum
    else:
        wsum_raw = jnp.sum(weights.astype(jnp.float32))
    wlsum = kernel_wlsum + tail_wlsum
    weighted = wlsum / jnp.maximum(wsum_raw, jnp.float32(1e-12))
    return jnp.where(wsum_raw > 1e-6, weighted, fallback)


# --------------------------- reference / tests --------------------------------

def _reference(pred, target, weights=None, *, beta=1.0 / 9.0,
               reduction='mean'):
    """Pure-JAX reference mirroring the PyTorch module exactly."""
    num = pred.shape[0]
    x = jnp.abs(pred.astype(jnp.float32) - target.astype(jnp.float32))
    loss = jnp.where(x >= beta, x - 0.5 * beta, 0.5 * x * x / beta)
    fallback = jnp.sum(loss) / num if reduction == 'mean' else jnp.sum(loss)
    if weights is None:
        return fallback
    w = weights.astype(jnp.float32)
    wsum = jnp.sum(w)                           # torch: weights.sum() (raw)
    weighted = jnp.sum(loss * w) / jnp.maximum(wsum, 1e-12)
    return jnp.where(wsum > 1e-6, weighted, fallback)


if __name__ == "__main__":
    key = jax.random.PRNGKey(0)
    k1, k2, k3, k4, k5, k6 = jax.random.split(key, 6)

    def check(got, want, tag):
        got = jax.block_until_ready(got)
        want = jax.block_until_ready(want)
        assert jnp.allclose(got, want, rtol=1e-4, atol=1e-5), (tag, got, want)

    # 1) Typical NCHW regression target, lane-aligned (2*4*16*16 = 2048 elems).
    pred = jax.random.normal(k1, (2, 4, 16, 16), dtype=jnp.float32)
    target = jax.random.normal(k2, (2, 4, 16, 16), dtype=jnp.float32)
    weights = jax.random.uniform(k3, (2, 4, 16, 16), dtype=jnp.float32)

    check(smooth_l1_loss(pred, target, None, reduction='mean'),
          _reference(pred, target, None, reduction='mean'), "mean")
    check(smooth_l1_loss(pred, target, None, reduction='sum'),
          _reference(pred, target, None, reduction='sum'), "sum")
    check(smooth_l1_loss(pred, target, weights),
          _reference(pred, target, weights), "weighted full")

    # Zero weights -> fallback branch (weights.sum() <= 1e-6).
    zw = jnp.zeros_like(weights)
    check(smooth_l1_loss(pred, target, zw),
          _reference(pred, target, zw), "zero-weight fallback")

    # 2) Non-multiple-of-128 element count (exercises the JAX tail path).
    p2 = jax.random.normal(k4, (2, 3, 7, 5), dtype=jnp.float32)
    t2 = jax.random.normal(k5, (2, 3, 7, 5), dtype=jnp.float32)
    w2 = jax.random.uniform(k6, (2, 3, 7, 5), dtype=jnp.float32)
    check(smooth_l1_loss(p2, t2, None), _reference(p2, t2, None), "tail mean")
    check(smooth_l1_loss(p2, t2, w2), _reference(p2, t2, w2), "tail weighted")

    # 3) Multi-block grid + masked edge block + per-sample broadcast weights
    #    (small block cap forces these paths at a tiny size).
    p3 = jax.random.normal(k1, (4, 5, 128), dtype=jnp.float32)
    t3 = jax.random.normal(k2, (4, 5, 128), dtype=jnp.float32)
    w3 = jax.random.uniform(k3, (4, 1, 1), dtype=jnp.float32)
    check(smooth_l1_loss(p3, t3, None, max_block_rows=8),
          _reference(p3, t3, None), "multi-block mean")
    check(smooth_l1_loss(p3, t3, w3, max_block_rows=8),
          _reference(p3, t3, w3), "multi-block per-sample weights")

    # 4) General broadcast weights (materialized fallback path).
    w4 = jax.random.uniform(k6, (2, 4, 1, 1), dtype=jnp.float32)
    check(smooth_l1_loss(pred, target, w4),
          _reference(pred, target, w4), "broadcast weights")

    print("KERNEL_OK")
</pallas_src>

<mosaic_0001>
module attributes {stable_mosaic.version = 11 : i64} {
  func.func @_sum_kernel(%arg0: i32, %arg1: i32, %arg2: memref<16x128xf32, #tpu.memory_space<vmem>>, %arg3: memref<16x128xf32, #tpu.memory_space<vmem>>, %arg4: memref<1x8x128xf32, #tpu.memory_space<vmem>>) attributes {dimension_semantics = [#tpu.dimension_semantics<parallel>, #tpu.dimension_semantics<arbitrary>], iteration_bounds = array<i64: 1, 1>, scalar_prefetch = 0 : i64, scratch_operands = 0 : i64, tpu.core_type = #tpu.core_type<tc>, window_params = [{transform_indices = @transform_0, window_bounds = array<i64: 16, 128>}, {transform_indices = @transform_1, window_bounds = array<i64: 16, 128>}, {transform_indices = @transform_2, window_bounds = array<i64: 1, 8, 128>}]} {
    %c0_i32 = arith.constant 0 : i32
    %0 = arith.cmpi eq, %arg1, %c0_i32 : i32
    %1 = arith.extui %0 : i1 to i32
    %c0_i32_0 = arith.constant 0 : i32
    %2 = arith.cmpi ne, %1, %c0_i32_0 : i32
    scf.if %2 {
      %cst_14 = arith.constant 0.000000e+00 : f32
      %25 = vector.broadcast %cst_14 : f32 to vector<8x128xf32>
      %c0_15 = arith.constant 0 : index
      %c0_16 = arith.constant 0 : index
      %c0_17 = arith.constant 0 : index
      %26 = vector.load %arg4[%c0_15, %c0_16, %c0_17] : memref<1x8x128xf32, #tpu.memory_space<vmem>>, vector<1x8x128xf32>
      %27 = vector.shape_cast %26 : vector<1x8x128xf32> to vector<8x128xf32>
      %28 = vector.shape_cast %25 : vector<8x128xf32> to vector<1x8x128xf32>
      tpu.vector_store %arg4[%c0_15, %c0_16, %c0_17], %28 {strides = array<i32>} : memref<1x8x128xf32, #tpu.memory_space<vmem>>, vector<1x8x128xf32>,
    } else {
    }
    %c0 = arith.constant 0 : index
    %c0_1 = arith.constant 0 : index
    %c0_2 = arith.constant 0 : index
    %3 = vector.load %arg4[%c0, %c0_1, %c0_2] : memref<1x8x128xf32, #tpu.memory_space<vmem>>, vector<1x8x128xf32>
    %4 = vector.shape_cast %3 : vector<1x8x128xf32> to vector<8x128xf32>
    %cst = arith.constant 0.000000e+00 : f32
    %5 = vector.broadcast %cst : f32 to vector<8x128xf32>
    %c0_3 = arith.constant 0 : index
    %c0_4 = arith.constant 0 : index
    %6 = vector.load %arg2[%c0_3, %c0_4] : memref<16x128xf32, #tpu.memory_space<vmem>>, vector<16x128xf32>
    %c0_5 = arith.constant 0 : index
    %c0_6 = arith.constant 0 : index
    %7 = vector.load %arg3[%c0_5, %c0_6] : memref<16x128xf32, #tpu.memory_space<vmem>>, vector<16x128xf32>
    %8 = arith.subf %6, %7 : vector<16x128xf32>
    %9 = math.absf %8 : vector<16x128xf32>
    %cst_7 = arith.constant 0.111111112 : f32
    %10 = vector.broadcast %cst_7 : f32 to vector<16x128xf32>
    %11 = arith.cmpf oge, %9, %10 : vector<16x128xf32>
    %cst_8 = arith.constant 0.055555556 : f32
    %12 = vector.broadcast %cst_8 : f32 to vector<16x128xf32>
    %13 = arith.subf %9, %12 : vector<16x128xf32>
    %14 = arith.mulf %9, %9 : vector<16x128xf32>
    %cst_9 = arith.constant 4.500000e+00 : f32
    %15 = vector.broadcast %cst_9 : f32 to vector<16x128xf32>
    %16 = arith.mulf %15, %14 : vector<16x128xf32>
    %17 = arith.select %11, %13, %16 : vector<16x128xi1>, vector<16x128xf32>
    %18 = vector.shape_cast %17 : vector<16x128xf32> to vector<2x8x128xf32>
    %cst_10 = arith.constant dense<0.000000e+00> : vector<8x128xf32>
    %19 = vector.multi_reduction <add>, %18, %cst_10 [0] : vector<2x8x128xf32> to vector<8x128xf32>
    %20 = arith.addf %5, %19 : vector<8x128xf32>
    %21 = arith.addf %4, %20 : vector<8x128xf32>
    %c0_11 = arith.constant 0 : index
    %c0_12 = arith.constant 0 : index
    %c0_13 = arith.constant 0 : index
    %22 = vector.load %arg4[%c0_11, %c0_12, %c0_13] : memref<1x8x128xf32, #tpu.memory_space<vmem>>, vector<1x8x128xf32>
    %23 = vector.shape_cast %22 : vector<1x8x128xf32> to vector<8x128xf32>
    %24 = vector.shape_cast %21 : vector<8x128xf32> to vector<1x8x128xf32>
    tpu.vector_store %arg4[%c0_11, %c0_12, %c0_13], %24 {strides = array<i32>} : memref<1x8x128xf32, #tpu.memory_space<vmem>>, vector<1x8x128xf32>,
    return
  }
  func.func @transform_0(%arg0: i32, %arg1: i32) -> (i32, i32) {
    %c1_i32 = arith.constant 1 : i32
    %0 = arith.muli %arg0, %c1_i32 : i32
    %1 = arith.addi %0, %arg1 : i32
    %c0_i32 = arith.constant 0 : i32
    %2 = arith.minsi %1, %c0_i32 : i32
    %c0_i32_0 = arith.constant 0 : i32
    %c0_i32_1 = arith.constant 0 : i32
    return %2, %c0_i32_0 : i32, i32
  }
  func.func @transform_1(%arg0: i32, %arg1: i32) -> (i32, i32) {
    %c1_i32 = arith.constant 1 : i32
    %0 = arith.muli %arg0, %c1_i32 : i32
    %1 = arith.addi %0, %arg1 : i32
    %c0_i32 = arith.constant 0 : i32
    %2 = arith.minsi %1, %c0_i32 : i32
    %c0_i32_0 = arith.constant 0 : i32
    %c0_i32_1 = arith.constant 0 : i32
    return %2, %c0_i32_0 : i32, i32
  }
  func.func @transform_2(%arg0: i32, %arg1: i32) -> (i32, i32, i32) {
    %c0_i32 = arith.constant 0 : i32
    %c0_i32_0 = arith.constant 0 : i32
    %c0_i32_1 = arith.constant 0 : i32
    return %arg0, %c0_i32, %c0_i32_0 : i32, i32, i32
  }
}

</mosaic_0001>

<llo_original>
// kernel: tpu_custom_call.1
$region0: #{tpu_custom_call.1}
  #allocation0 [shape = 'u32[]', space=smem, size = 0x4, offset = 0x4, fixed_abs, tag = 'smem constant byte address 0x4 - core index']
  #allocation1 [shape = 'u32[144,128]{1,0:T(1,128)}', space=vmem, size = 0x12000, scoped, tag = 'internal scratch']
  %s0 = inlined_call_operand.hbm [shape: f32[16,128], index: 0, kind: input, shape index: {}]
  %s1 = inlined_call_operand.hbm [shape: f32[16,128], index: 1, kind: input, shape index: {}]
  %s2 = inlined_call_operand.hbm [shape: f32[1,8,128], index: 2, kind: output, shape index: {}]
  %s3 = sld [smem:[#allocation0]]
  $region30: #{tpu_custom_call.1} parent=0
    _
  %s5 = ssub.s32 1, %s3
  %s6 = scalar_select 0, %s5, %s3
  $region1: #{tpu_custom_call.1} parent=0
    #allocation2 [shape = 'u8[8192]{0}', space=vmem, size = 0x2000, scoped, tag = 'input window, operand 0, single buffered']
    #allocation3 [shape = 's32[1]{0}', space=sflag, size = 0x4, scoped, tag = 'scoped memory for tpu_custom_call.1']
    #allocation4 [shape = 's32[1]{0}', space=sflag, size = 0x4, scoped, tag = 'scoped memory for tpu_custom_call.1']
    #allocation5 [shape = 'u8[8192]{0}', space=vmem, size = 0x2000, scoped, tag = 'input window, operand 1, single buffered']
    #allocation6 [shape = 's32[1]{0}', space=sflag, size = 0x4, scoped, tag = 'scoped memory for tpu_custom_call.1']
    #allocation7 [shape = 'u8[4096]{0}', space=vmem, size = 0x1000, scoped, tag = 'output window, operand 0, single buffered']
    %7 = vsyncpa [#allocation3], 0
    %8 = vsyncpa [#allocation6], 0
    %9 = vsyncpa [#allocation4], 0
    // Predicated region
    $region2: #{tpu_custom_call.1} parent=1 // pred_check
      _
    $region3: #{tpu_custom_call.1} parent=1 // pred_check_branch
      %11 = sbr.rel (0) target = $region5
    $region4: #{tpu_custom_call.1} parent=1 // pred_region
      %s12 = sadd.s32 0, 0
      %p13 = scmp.lt.s32.totalorder %s12, 0
      %s14 = scalar_select %p13, %s12, 0
      %s15 = smul.u32 2, %s14
      %s17 = ssub.s32 256, 256
      %18 = vsyncadd [#allocation3], %s17
      %s19 = smul.addr %s15, 128
      %s20 = scalar_lea.hbm %s0, %s19
      %s21 = sshll.u32 [#allocation2], 4
      %s22 = int_to_ptr.vmem [resolvable:$true] %s21
      %27 = dma.hbm_to_vmem [thread:$0]  %s20, 256, %s22, [#allocation3], 128, 128, 8
    $region5: #{tpu_custom_call.1} parent=1 // pred_fallthru
      _
    // Predicated region
    $region6: #{tpu_custom_call.1} parent=1 // pred_check
      _
    $region7: #{tpu_custom_call.1} parent=1 // pred_check_branch
      %29 = sbr.rel (0) target = $region9
    $region8: #{tpu_custom_call.1} parent=1 // pred_region
      %s30 = sadd.s32 0, 0
      %p31 = scmp.lt.s32.totalorder %s30, 0
      %s32 = scalar_select %p31, %s30, 0
      %s33 = smul.u32 2, %s32
      %s35 = ssub.s32 256, 256
      %36 = vsyncadd [#allocation6], %s35
      %s37 = smul.addr %s33, 128
      %s38 = scalar_lea.hbm %s1, %s37
      %s39 = sshll.u32 [#allocation5], 4
      %s40 = int_to_ptr.vmem [resolvable:$true] %s39
      %45 = dma.hbm_to_vmem [thread:$0]  %s38, 256, %s40, [#allocation6], 128, 128, 8
    $region9: #{tpu_custom_call.1} parent=1 // pred_fallthru
      _
    // Predicated region
    $region10: #{tpu_custom_call.1} parent=1 // pred_check
      _
    $region11: #{tpu_custom_call.1} parent=1 // pred_check_branch
      %47 = sbr.rel (0) target = $region13
    $region12: #{tpu_custom_call.1} parent=1 // pred_region
      %48 = dma.done [#allocation3], 256
    $region13: #{tpu_custom_call.1} parent=1 // pred_fallthru
      _
    // Predicated region
    $region14: #{tpu_custom_call.1} parent=1 // pred_check
      _
    $region15: #{tpu_custom_call.1} parent=1 // pred_check_branch
      %50 = sbr.rel (0) target = $region17
    $region16: #{tpu_custom_call.1} parent=1 // pred_region
      %51 = dma.done [#allocation6], 256
    $region17: #{tpu_custom_call.1} parent=1 // pred_fallthru
      _
    %s52 = sadd.s32 0, 0
    %p53 = scmp.lt.s32.totalorder %s52, 0
    %s54 = scalar_select %p53, %s52, 0
    %s55 = smul.u32 2, %s54
    %s56 = sadd.s32 0, 0
    %p57 = scmp.lt.s32.totalorder %s56, 0
    %s58 = scalar_select %p57, %s56, 0
    %s59 = smul.u32 2, %s58
    %p60 = scmp.eq.s32.totalorder 0, 0
    // Predicated region
    $region18: #{tpu_custom_call.1} parent=1 // pred_check
      %p61 = pneg %p60
    $region19: #{tpu_custom_call.1} parent=1 // pred_check_branch
      %63 = sbr.rel (%p61) target = $region21
    $region20: #{tpu_custom_call.1} parent=1 // pred_region
      %64 = vst [vmem:[#allocation7] sm:$0xff] 0.0
    $region21: #{tpu_custom_call.1} parent=1 // pred_fallthru
      _
    %v65 = vld [vmem:[#allocation7] sm:$0xff]
    %v66 = vld [vmem:[#allocation2] sm:$0xff]
    %v67 = vld [vmem:[#allocation2 + $0x8] sm:$0xff]
    %v68 = vld [vmem:[#allocation5] sm:$0xff]
    %v69 = vld [vmem:[#allocation5 + $0x8] sm:$0xff]
    %v70 = vsub.f32 %v66, %v68
    %v71 = vsub.f32 %v67, %v69
    %v72 = vand.u32 2147483647, %v70
    %v73 = vand.u32 2147483647, %v71
    %vm74 = vcmp.ge.f32.partialorder %v72, 0.11111111
    %vm75 = vcmp.ge.f32.partialorder %v73, 0.11111111
    %v76 = vsub.f32 %v72, 0.055555556
    %v77 = vsub.f32 %v73, 0.055555556
    %v78 = vmul.f32 %v72, %v72
    %v79 = vmul.f32 %v73, %v73
    %v80 = vmul.f32 %v78, 4.5
    %v81 = vmul.f32 %v79, 4.5
    %v82 = vsel %vm74, %v76, %v80
    %v83 = vsel %vm75, %v77, %v81
    %v84 = vadd.f32 %v82, %v83
    %v85 = vadd.f32 %v84, 0.0
    %v86 = vadd.f32 %v65, %v85
    %87 = vst [vmem:[#allocation7] sm:$0xff] %v86
    // Predicated region
    $region22: #{tpu_custom_call.1} parent=1 // pred_check
      _
    $region23: #{tpu_custom_call.1} parent=1 // pred_check_branch
      %89 = sbr.rel (0) target = $region25
    $region24: #{tpu_custom_call.1} parent=1 // pred_region
      %s91 = ssub.s32 128, 128
      %92 = vsyncadd [#allocation4], %s91
      %s94 = sshll.u32 [#allocation7], 4
      %s95 = int_to_ptr.vmem [resolvable:$true] %s94
      %97 = dma.vmem_to_hbm [thread:$0]  %s95, 128, %s2, [#allocation4]
    $region25: #{tpu_custom_call.1} parent=1 // pred_fallthru
      _
    // Predicated region
    $region26: #{tpu_custom_call.1} parent=1 // pred_check
      _
    $region27: #{tpu_custom_call.1} parent=1 // pred_check_branch
      %99 = sbr.rel (0) target = $region29
    $region28: #{tpu_custom_call.1} parent=1 // pred_region
      %100 = dma.done [#allocation4], 128
    $region29: #{tpu_custom_call.1} parent=1 // pred_fallthru
      _
    %101 = vsyncpa [#allocation3], 1
    %102 = vsyncpa [#allocation6], 1
    %103 = vsyncpa [#allocation4], 1

</llo_original>
